<compile_context>
chip_gen: v5e
topology: v5e:2x2
jax: 0.10.0
libtpu: 0.0.40
codegen_flags: <defaults>
</compile_context>

<pallas_src>
import jax
import jax.numpy as jnp
from jax.experimental import pallas as pl
from jax.experimental.pallas import tpu as pltpu


def tanh_kernel(x_ref, o_ref):
    # Single stable EUP tanh; mathematically identical to
    # (e^x - e^-x) / (e^x + e^-x) but without overflow for large |x|.
    o_ref[...] = jnp.tanh(x_ref[...])


def _lane_width(n, max_w):
    """Largest multiple of 128 (<= max_w) that evenly divides n, else None."""
    w = min(max_w, n)
    w -= w % 128
    while w >= 128:
        if n % w == 0:
            return w
        w -= 128
    return None


def _pick_block(dim, unit, target):
    """Block size along one axis: full dim if small, else a multiple of
    `unit` near `target` (ragged tail blocks are handled by Pallas)."""
    if dim <= unit:
        return dim  # == full array dim (allowed by Mosaic)
    b = max(unit, min(target, dim))
    return ((b + unit - 1) // unit) * unit


def tanh_pallas(x, *, tile_bytes=4 * 1024 * 1024, max_lane=2048):
    """Elementwise tanh via Pallas. Accepts any-rank input."""
    orig_shape = x.shape
    n = x.size
    if n == 0:
        return x

    itemsize = jnp.dtype(x.dtype).itemsize
    # Sublane packing unit: 8 for 32-bit, 16 for bf16/fp16, 32 for 8-bit.
    sub_unit = {4: 8, 2: 16, 1: 32}.get(itemsize, 8)

    # Lane-dense layout without any padding copy: fold the flat element count
    # into (rows, W) with W a multiple of 128 when possible.
    w = _lane_width(n, max_lane)
    if w is not None:
        x2 = x.reshape(n // w, w)
    elif x.ndim >= 2:
        x2 = x.reshape(-1, orig_shape[-1])
    else:
        x2 = x.reshape(1, n)
    R, C = x2.shape

    # Large tiles: lane block up to `max_lane`, row block sized so one tile is
    # ~tile_bytes (=> ~4x tile_bytes total with in+out double buffering).
    bc = _pick_block(C, 128, max_lane)
    rows_target = max(sub_unit,
                      (tile_bytes // (bc * itemsize)) // sub_unit * sub_unit)
    br = _pick_block(R, sub_unit, rows_target)

    # v7x has 2 TensorCores: avoid a (1, 1) grid for splittable inputs so both
    # cores (and their share of HBM bandwidth) get work.
    if pl.cdiv(R, br) * pl.cdiv(C, bc) == 1 and R > sub_unit:
        br = ((pl.cdiv(R, 2) + sub_unit - 1) // sub_unit) * sub_unit

    grid = (pl.cdiv(R, br), pl.cdiv(C, bc))

    out = pl.pallas_call(
        tanh_kernel,
        out_shape=jax.ShapeDtypeStruct((R, C), x2.dtype),
        grid=grid,
        in_specs=[pl.BlockSpec((br, bc), lambda i, j: (i, j))],
        out_specs=pl.BlockSpec((br, bc), lambda i, j: (i, j)),
        compiler_params=pltpu.CompilerParams(
            dimension_semantics=("parallel", "parallel"),
            vmem_limit_bytes=32 * 1024 * 1024,
        ),
    )(x2)

    # Contiguous reshape back to the caller's shape (free; dtype preserved).
    return out.reshape(orig_shape)


if __name__ == "__main__":
    key = jax.random.PRNGKey(0)

    # Primary shape consistent with an RNN-style activation: (batch, seq, hidden)
    x = jax.random.normal(key, (2, 8, 32), dtype=jnp.float32)
    y = jax.block_until_ready(tanh_pallas(x))
    ref = (jnp.exp(x) - jnp.exp(-x)) / (jnp.exp(x) + jnp.exp(-x))
    assert y.shape == x.shape and y.dtype == x.dtype
    assert jnp.allclose(y, ref, atol=1e-5, rtol=1e-5)
    assert jnp.allclose(y, jnp.tanh(x), atol=1e-6, rtol=1e-6)

    # Ragged / non-128-divisible path (exercises edge-block clipping).
    k2 = jax.random.split(key)[0]
    x2 = jax.random.normal(k2, (3, 5, 7), dtype=jnp.float32)
    y2 = jax.block_until_ready(tanh_pallas(x2))
    assert jnp.allclose(y2, jnp.tanh(x2), atol=1e-6, rtol=1e-6)

    print("KERNEL_OK")
</pallas_src>

<mosaic_0001>
module attributes {stable_mosaic.version = 11 : i64} {
  func.func @tanh_kernel(%arg0: i32, %arg1: i32, %arg2: memref<1x512xf32, #tpu.memory_space<vmem>>, %arg3: memref<1x512xf32, #tpu.memory_space<vmem>>) attributes {dimension_semantics = [#tpu.dimension_semantics<parallel>, #tpu.dimension_semantics<parallel>], iteration_bounds = array<i64: 1, 1>, scalar_prefetch = 0 : i64, scratch_operands = 0 : i64, tpu.core_type = #tpu.core_type<tc>, window_params = [{transform_indices = @transform_0, window_bounds = array<i64: 1, 512>}, {transform_indices = @transform_1, window_bounds = array<i64: 1, 512>}]} {
    %c0 = arith.constant 0 : index
    %c0_0 = arith.constant 0 : index
    %0 = vector.load %arg2[%c0, %c0_0] : memref<1x512xf32, #tpu.memory_space<vmem>>, vector<1x512xf32>
    %1 = math.tanh %0 : vector<1x512xf32>
    %c0_1 = arith.constant 0 : index
    %c0_2 = arith.constant 0 : index
    %2 = vector.load %arg3[%c0_1, %c0_2] : memref<1x512xf32, #tpu.memory_space<vmem>>, vector<1x512xf32>
    tpu.vector_store %arg3[%c0_1, %c0_2], %1 {strides = array<i32>} : memref<1x512xf32, #tpu.memory_space<vmem>>, vector<1x512xf32>,
    return
  }
  func.func @transform_0(%arg0: i32, %arg1: i32) -> (i32, i32) {
    %c0_i32 = arith.constant 0 : i32
    return %arg0, %arg1 : i32, i32
  }
  func.func @transform_1(%arg0: i32, %arg1: i32) -> (i32, i32) {
    %c0_i32 = arith.constant 0 : i32
    return %arg0, %arg1 : i32, i32
  }
}

</mosaic_0001>

<llo_original>
// kernel: tpu_custom_call.1
$region0: #{tpu_custom_call.1}
  #allocation0 [shape = 'u32[]', space=smem, size = 0x4, offset = 0x4, fixed_abs, tag = 'smem constant byte address 0x4 - core index']
  #allocation1 [shape = 'u32[72,128]{1,0:T(1,128)}', space=vmem, size = 0x9000, scoped, tag = 'internal scratch']
  %s0 = inlined_call_operand.hbm [shape: f32[1,512], index: 0, kind: input, shape index: {}]
  %s1 = inlined_call_operand.hbm [shape: f32[1,512], index: 1, kind: output, shape index: {}]
  %s2 = sld [smem:[#allocation0]]
  $region18: #{tpu_custom_call.1} parent=0
    _
  %s4 = ssub.s32 1, %s2
  %s5 = scalar_select 0, %s4, %s2
  $region1: #{tpu_custom_call.1} parent=0
    #allocation2 [shape = 'u8[2048]{0}', space=vmem, size = 0x800, scoped, tag = 'input window, operand 0, single buffered']
    #allocation3 [shape = 's32[1]{0}', space=sflag, size = 0x4, scoped, tag = 'scoped memory for tpu_custom_call.1']
    #allocation4 [shape = 's32[1]{0}', space=sflag, size = 0x4, scoped, tag = 'scoped memory for tpu_custom_call.1']
    #allocation5 [shape = 'u8[2048]{0}', space=vmem, size = 0x800, scoped, tag = 'output window, operand 0, single buffered']
    %6 = vsyncpa [#allocation3], 0
    %7 = vsyncpa [#allocation4], 0
    // Predicated region
    $region2: #{tpu_custom_call.1} parent=1 // pred_check
      _
    $region3: #{tpu_custom_call.1} parent=1 // pred_check_branch
      %9 = sbr.rel (0) target = $region5
    $region4: #{tpu_custom_call.1} parent=1 // pred_region
      %11 = vsyncadd [#allocation3], 0
      %s13 = sshll.u32 %s0, 4
      %s14 = int_to_ptr.hbm [resolvable:$true] %s13
      %s15 = sshll.u32 [#allocation2], 4
      %s16 = int_to_ptr.vmem [resolvable:$true] %s15
      %18 = dma.hbm_to_vmem [thread:$0]  %s14, 64, %s16, [#allocation3]
    $region5: #{tpu_custom_call.1} parent=1 // pred_fallthru
      _
    // Predicated region
    $region6: #{tpu_custom_call.1} parent=1 // pred_check
      _
    $region7: #{tpu_custom_call.1} parent=1 // pred_check_branch
      %20 = sbr.rel (0) target = $region9
    $region8: #{tpu_custom_call.1} parent=1 // pred_region
      %22 = dma.done [#allocation3], 64
    $region9: #{tpu_custom_call.1} parent=1 // pred_fallthru
      _
    %v23 = vld [vmem:[#allocation2] sm:$0xf]
    %v24 = vtanh.pop %v23
    %v25 = vlaneseq
    %vm26 = vcmp.ge.s32.totalorder %v25, 0
    %vm27 = vcmp.lt.s32.totalorder %v25, 512
    %vm28 = vmand %vm26, %vm27
    %29 = vst.msk [vmem:[#allocation5] sm:$0xf] %vm28, %v24
    // Predicated region
    $region10: #{tpu_custom_call.1} parent=1 // pred_check
      _
    $region11: #{tpu_custom_call.1} parent=1 // pred_check_branch
      %31 = sbr.rel (0) target = $region13
    $region12: #{tpu_custom_call.1} parent=1 // pred_region
      %33 = vsyncadd [#allocation4], 0
      %s35 = sshll.u32 [#allocation5], 4
      %s36 = int_to_ptr.vmem [resolvable:$true] %s35
      %s37 = sshll.u32 %s1, 4
      %s38 = int_to_ptr.hbm [resolvable:$true] %s37
      %40 = dma.vmem_to_hbm [thread:$0]  %s36, 64, %s38, [#allocation4]
    $region13: #{tpu_custom_call.1} parent=1 // pred_fallthru
      _
    // Predicated region
    $region14: #{tpu_custom_call.1} parent=1 // pred_check
      _
    $region15: #{tpu_custom_call.1} parent=1 // pred_check_branch
      %42 = sbr.rel (0) target = $region17
    $region16: #{tpu_custom_call.1} parent=1 // pred_region
      %44 = dma.done [#allocation4], 64
    $region17: #{tpu_custom_call.1} parent=1 // pred_fallthru
      _
    %45 = vsyncpa [#allocation3], 1
    %46 = vsyncpa [#allocation4], 1

</llo_original>
